<compile_context>
chip_gen: v5e
topology: v5e:2x2
jax: 0.10.0
libtpu: 0.0.40
codegen_flags: <defaults>
</compile_context>

<pallas_src>
import jax
import jax.numpy as jnp
from jax import lax
from jax.experimental import pallas as pl
from jax.experimental.pallas import tpu as pltpu


def _clip_embedding_kernel(tok_ref, emb_hbm, pos_ref, out_ref, staged, sems):
    """One grid step = one batch element.

    tok_ref : SMEM (B, S) int32 token ids (scalar-prefetched)
    emb_hbm : HBM-resident (V, D) embedding table (no auto-DMA)
    pos_ref : VMEM (S, D) positional embedding (resident across steps)
    out_ref : VMEM (1, S, D) output tile for this batch element
    staged  : VMEM (2, S, D) double-buffered gather staging
    sems    : DMA semaphores, one per staging slot
    """
    b = pl.program_id(0)
    nb = pl.num_programs(0)
    S = pos_ref.shape[0]
    V = emb_hbm.shape[0]

    def issue_batch(batch_idx, slot):
        # Fully unrolled descriptor-issue loop: SMEM id read, scalar clamp,
        # and DMA start for every row, back to back.
        def body(i, carry):
            tok = tok_ref[batch_idx, i]
            tok = jnp.minimum(jnp.maximum(tok, 0), V - 1)  # in-bounds address
            pltpu.make_async_copy(
                emb_hbm.at[pl.ds(tok, 1), :],
                staged.at[slot, pl.ds(i, 1), :],
                sems.at[slot],
            ).start()
            return carry

        lax.fori_loop(0, S, body, 0, unroll=True)

    # Prime slot 0 with this (first) batch's gather.
    @pl.when(b == 0)
    def _prime():
        issue_batch(0, 0)

    # Prefetch the next batch's rows into the other slot; these DMAs overlap
    # this step's wait + VPU add + output writeback.
    @pl.when(b + 1 < nb)
    def _prefetch():
        issue_batch(b + 1, (b + 1) & 1)

    # Aggregate drain: one wait whose descriptor covers the whole (S, D)
    # slot, i.e. exactly the sum of the S row-copy byte counts issued into
    # this slot's semaphore.  Per-slot semaphores keep overlapping steps'
    # byte counts from mixing.
    slot = b & 1
    pltpu.make_async_copy(staged.at[slot], staged.at[slot], sems.at[slot]).wait()

    # Single vectorized positional add (VPU) + dense lane-major (S, D) store.
    # The explicit f32 add keeps the path fast on v5e if bf16 tables are used
    # (no-op for f32 inputs).
    x = staged[slot].astype(jnp.float32) + pos_ref[...].astype(jnp.float32)
    out_ref[0, :, :] = x.astype(out_ref.dtype)


def clip_embedding(tokens, token_embedding, position_embedding):
    """tokens: [B, S] int -> [B, S, D]  (nn.Embedding lookup + pos-emb add)."""
    B, S = tokens.shape
    V, D = token_embedding.shape
    assert position_embedding.shape == (S, D)

    if tokens.dtype != jnp.int32:
        tokens = tokens.astype(jnp.int32)

    return pl.pallas_call(
        _clip_embedding_kernel,
        out_shape=jax.ShapeDtypeStruct((B, S, D), token_embedding.dtype),
        grid_spec=pltpu.PrefetchScalarGridSpec(
            # Token ids land in SMEM before the grid runs; they are also
            # passed (unused) to every index_map as a trailing argument.
            num_scalar_prefetch=1,
            grid=(B,),
            in_specs=[
                # Embedding table: leave in HBM, DMA only the S needed rows.
                pl.BlockSpec(memory_space=pl.ANY),
                # Positional embedding: small, resident across all steps.
                pl.BlockSpec((S, D), lambda b, tok: (0, 0)),
            ],
            out_specs=pl.BlockSpec((1, S, D), lambda b, tok: (b, 0, 0)),
            scratch_shapes=[
                pltpu.VMEM((2, S, D), token_embedding.dtype),  # double buffer
                pltpu.SemaphoreType.DMA((2,)),                 # one per slot
            ],
        ),
        compiler_params=pltpu.CompilerParams(
            # Must stay sequential: cross-step prefetch + slot-0 priming
            # assume one core walks the grid in order.
            dimension_semantics=("arbitrary",),
        ),
    )(tokens, token_embedding, position_embedding)


if __name__ == "__main__":
    # Small deterministic shapes consistent with the module's __init__.
    # D = 128 keeps the output store lane-dense.
    n_vocab, n_embd, n_token, batch = 64, 128, 8, 2

    key = jax.random.PRNGKey(0)
    k_emb, k_pos, k_tok = jax.random.split(key, 3)

    token_embedding = jax.random.normal(k_emb, (n_vocab, n_embd), dtype=jnp.float32)
    position_embedding = jax.random.normal(k_pos, (n_token, n_embd), dtype=jnp.float32)
    tokens = jax.random.randint(k_tok, (batch, n_token), 0, n_vocab, dtype=jnp.int32)

    out = clip_embedding(tokens, token_embedding, position_embedding)
    out = jax.block_until_ready(out)

    # Reference (plain JAX) check of the forward semantics.
    ref = jnp.take(token_embedding, tokens, axis=0) + position_embedding[None, :, :]
    assert out.shape == (batch, n_token, n_embd)
    assert jnp.allclose(out, ref, atol=1e-5, rtol=1e-5)

    print("KERNEL_OK")
</pallas_src>

<mosaic_0001>
module attributes {stable_mosaic.version = 11 : i64} {
  func.func @_clip_embedding_kernel(%arg0: i32, %arg1: memref<2x8xi32, #tpu.memory_space<smem>>, %arg2: memref<64x128xf32, #tpu.memory_space<any>>, %arg3: memref<8x128xf32, #tpu.memory_space<vmem>>, %arg4: memref<1x8x128xf32, #tpu.memory_space<vmem>>, %arg5: memref<2x8x128xf32, #tpu.memory_space<vmem>>, %arg6: memref<2x!tpu.dma_semaphore, #tpu.memory_space<semaphore_mem>>) attributes {dimension_semantics = [#tpu.dimension_semantics<arbitrary>], iteration_bounds = array<i64: 2>, scalar_prefetch = 1 : i64, scratch_operands = 2 : i64, tpu.core_type = #tpu.core_type<tc>, window_params = [{}, {pipeline_mode = #tpu.pipeline_mode<synchronous>, transform_indices = @transform_1, window_bounds = array<i64: 8, 128>}, {transform_indices = @transform_2, window_bounds = array<i64: 1, 8, 128>}]} {
    %c0_i32 = arith.constant 0 : i32
    %0 = arith.cmpi eq, %arg0, %c0_i32 : i32
    %1 = arith.extui %0 : i1 to i32
    %c0_i32_0 = arith.constant 0 : i32
    %2 = arith.cmpi ne, %1, %c0_i32_0 : i32
    scf.if %2 {
      %c0_i32_13 = arith.constant 0 : i32
      %c0_14 = arith.constant 0 : index
      %22 = arith.index_cast %c0_i32_13 : i32 to index
      %23 = memref.load %arg1[%c0_14, %22] : memref<2x8xi32, #tpu.memory_space<smem>>
      %c0_i32_15 = arith.constant 0 : i32
      %24 = arith.maxsi %23, %c0_i32_15 : i32
      %c63_i32 = arith.constant 63 : i32
      %25 = arith.minsi %24, %c63_i32 : i32
      %c0_i32_16 = arith.constant 0 : i32
      %c0_i32_17 = arith.constant 0 : i32
      %c0_i32_18 = arith.constant 0 : i32
      %26 = tpu.memref_slice %arg2[%25, %c0_i32_18] : memref<64x128xf32, #tpu.memory_space<any>> -> memref<1x128xf32, #tpu.memory_space<any>>
      %c0_i32_19 = arith.constant 0 : i32
      %27 = tpu.memref_slice %arg5[%c0_i32_16, %c0_i32_13, %c0_i32_19] : memref<2x8x128xf32, #tpu.memory_space<vmem>> -> memref<1x1x128xf32, #tpu.memory_space<vmem>>
      %28 = tpu.memref_squeeze %27 : memref<1x1x128xf32, #tpu.memory_space<vmem>> -> memref<1x128xf32, #tpu.memory_space<vmem>>
      %29 = tpu.memref_slice %arg6[%c0_i32_17] : memref<2x!tpu.dma_semaphore, #tpu.memory_space<semaphore_mem>> -> memref<1x!tpu.dma_semaphore, #tpu.memory_space<semaphore_mem>>
      %30 = tpu.memref_squeeze %29 : memref<1x!tpu.dma_semaphore, #tpu.memory_space<semaphore_mem>> -> memref<!tpu.dma_semaphore, #tpu.memory_space<semaphore_mem>>
      tpu.enqueue_dma source(%26 : memref<1x128xf32, #tpu.memory_space<any>>) target(%28 : memref<1x128xf32, #tpu.memory_space<vmem>>) target_semaphore(%30 : memref<!tpu.dma_semaphore, #tpu.memory_space<semaphore_mem>>)
      %c1_i32_20 = arith.constant 1 : i32
      %c0_21 = arith.constant 0 : index
      %31 = arith.index_cast %c1_i32_20 : i32 to index
      %32 = memref.load %arg1[%c0_21, %31] : memref<2x8xi32, #tpu.memory_space<smem>>
      %c0_i32_22 = arith.constant 0 : i32
      %33 = arith.maxsi %32, %c0_i32_22 : i32
      %c63_i32_23 = arith.constant 63 : i32
      %34 = arith.minsi %33, %c63_i32_23 : i32
      %c0_i32_24 = arith.constant 0 : i32
      %c0_i32_25 = arith.constant 0 : i32
      %c0_i32_26 = arith.constant 0 : i32
      %35 = tpu.memref_slice %arg2[%34, %c0_i32_26] : memref<64x128xf32, #tpu.memory_space<any>> -> memref<1x128xf32, #tpu.memory_space<any>>
      %c0_i32_27 = arith.constant 0 : i32
      %36 = tpu.memref_slice %arg5[%c0_i32_24, %c1_i32_20, %c0_i32_27] : memref<2x8x128xf32, #tpu.memory_space<vmem>> -> memref<1x1x128xf32, #tpu.memory_space<vmem>>
      %37 = tpu.memref_squeeze %36 : memref<1x1x128xf32, #tpu.memory_space<vmem>> -> memref<1x128xf32, #tpu.memory_space<vmem>>
      %38 = tpu.memref_slice %arg6[%c0_i32_25] : memref<2x!tpu.dma_semaphore, #tpu.memory_space<semaphore_mem>> -> memref<1x!tpu.dma_semaphore, #tpu.memory_space<semaphore_mem>>
      %39 = tpu.memref_squeeze %38 : memref<1x!tpu.dma_semaphore, #tpu.memory_space<semaphore_mem>> -> memref<!tpu.dma_semaphore, #tpu.memory_space<semaphore_mem>>
      tpu.enqueue_dma source(%35 : memref<1x128xf32, #tpu.memory_space<any>>) target(%37 : memref<1x128xf32, #tpu.memory_space<vmem>>) target_semaphore(%39 : memref<!tpu.dma_semaphore, #tpu.memory_space<semaphore_mem>>)
      %c2_i32_28 = arith.constant 2 : i32
      %c0_29 = arith.constant 0 : index
      %40 = arith.index_cast %c2_i32_28 : i32 to index
      %41 = memref.load %arg1[%c0_29, %40] : memref<2x8xi32, #tpu.memory_space<smem>>
      %c0_i32_30 = arith.constant 0 : i32
      %42 = arith.maxsi %41, %c0_i32_30 : i32
      %c63_i32_31 = arith.constant 63 : i32
      %43 = arith.minsi %42, %c63_i32_31 : i32
      %c0_i32_32 = arith.constant 0 : i32
      %c0_i32_33 = arith.constant 0 : i32
      %c0_i32_34 = arith.constant 0 : i32
      %44 = tpu.memref_slice %arg2[%43, %c0_i32_34] : memref<64x128xf32, #tpu.memory_space<any>> -> memref<1x128xf32, #tpu.memory_space<any>>
      %c0_i32_35 = arith.constant 0 : i32
      %45 = tpu.memref_slice %arg5[%c0_i32_32, %c2_i32_28, %c0_i32_35] : memref<2x8x128xf32, #tpu.memory_space<vmem>> -> memref<1x1x128xf32, #tpu.memory_space<vmem>>
      %46 = tpu.memref_squeeze %45 : memref<1x1x128xf32, #tpu.memory_space<vmem>> -> memref<1x128xf32, #tpu.memory_space<vmem>>
      %47 = tpu.memref_slice %arg6[%c0_i32_33] : memref<2x!tpu.dma_semaphore, #tpu.memory_space<semaphore_mem>> -> memref<1x!tpu.dma_semaphore, #tpu.memory_space<semaphore_mem>>
      %48 = tpu.memref_squeeze %47 : memref<1x!tpu.dma_semaphore, #tpu.memory_space<semaphore_mem>> -> memref<!tpu.dma_semaphore, #tpu.memory_space<semaphore_mem>>
      tpu.enqueue_dma source(%44 : memref<1x128xf32, #tpu.memory_space<any>>) target(%46 : memref<1x128xf32, #tpu.memory_space<vmem>>) target_semaphore(%48 : memref<!tpu.dma_semaphore, #tpu.memory_space<semaphore_mem>>)
      %c3_i32 = arith.constant 3 : i32
      %c0_36 = arith.constant 0 : index
      %49 = arith.index_cast %c3_i32 : i32 to index
      %50 = memref.load %arg1[%c0_36, %49] : memref<2x8xi32, #tpu.memory_space<smem>>
      %c0_i32_37 = arith.constant 0 : i32
      %51 = arith.maxsi %50, %c0_i32_37 : i32
      %c63_i32_38 = arith.constant 63 : i32
      %52 = arith.minsi %51, %c63_i32_38 : i32
      %c0_i32_39 = arith.constant 0 : i32
      %c0_i32_40 = arith.constant 0 : i32
      %c0_i32_41 = arith.constant 0 : i32
      %53 = tpu.memref_slice %arg2[%52, %c0_i32_41] : memref<64x128xf32, #tpu.memory_space<any>> -> memref<1x128xf32, #tpu.memory_space<any>>
      %c0_i32_42 = arith.constant 0 : i32
      %54 = tpu.memref_slice %arg5[%c0_i32_39, %c3_i32, %c0_i32_42] : memref<2x8x128xf32, #tpu.memory_space<vmem>> -> memref<1x1x128xf32, #tpu.memory_space<vmem>>
      %55 = tpu.memref_squeeze %54 : memref<1x1x128xf32, #tpu.memory_space<vmem>> -> memref<1x128xf32, #tpu.memory_space<vmem>>
      %56 = tpu.memref_slice %arg6[%c0_i32_40] : memref<2x!tpu.dma_semaphore, #tpu.memory_space<semaphore_mem>> -> memref<1x!tpu.dma_semaphore, #tpu.memory_space<semaphore_mem>>
      %57 = tpu.memref_squeeze %56 : memref<1x!tpu.dma_semaphore, #tpu.memory_space<semaphore_mem>> -> memref<!tpu.dma_semaphore, #tpu.memory_space<semaphore_mem>>
      tpu.enqueue_dma source(%53 : memref<1x128xf32, #tpu.memory_space<any>>) target(%55 : memref<1x128xf32, #tpu.memory_space<vmem>>) target_semaphore(%57 : memref<!tpu.dma_semaphore, #tpu.memory_space<semaphore_mem>>)
      %c4_i32 = arith.constant 4 : i32
      %c0_43 = arith.constant 0 : index
      %58 = arith.index_cast %c4_i32 : i32 to index
      %59 = memref.load %arg1[%c0_43, %58] : memref<2x8xi32, #tpu.memory_space<smem>>
      %c0_i32_44 = arith.constant 0 : i32
      %60 = arith.maxsi %59, %c0_i32_44 : i32
      %c63_i32_45 = arith.constant 63 : i32
      %61 = arith.minsi %60, %c63_i32_45 : i32
      %c0_i32_46 = arith.constant 0 : i32
      %c0_i32_47 = arith.constant 0 : i32
      %c0_i32_48 = arith.constant 0 : i32
      %62 = tpu.memref_slice %arg2[%61, %c0_i32_48] : memref<64x128xf32, #tpu.memory_space<any>> -> memref<1x128xf32, #tpu.memory_space<any>>
      %c0_i32_49 = arith.constant 0 : i32
      %63 = tpu.memref_slice %arg5[%c0_i32_46, %c4_i32, %c0_i32_49] : memref<2x8x128xf32, #tpu.memory_space<vmem>> -> memref<1x1x128xf32, #tpu.memory_space<vmem>>
      %64 = tpu.memref_squeeze %63 : memref<1x1x128xf32, #tpu.memory_space<vmem>> -> memref<1x128xf32, #tpu.memory_space<vmem>>
      %65 = tpu.memref_slice %arg6[%c0_i32_47] : memref<2x!tpu.dma_semaphore, #tpu.memory_space<semaphore_mem>> -> memref<1x!tpu.dma_semaphore, #tpu.memory_space<semaphore_mem>>
      %66 = tpu.memref_squeeze %65 : memref<1x!tpu.dma_semaphore, #tpu.memory_space<semaphore_mem>> -> memref<!tpu.dma_semaphore, #tpu.memory_space<semaphore_mem>>
      tpu.enqueue_dma source(%62 : memref<1x128xf32, #tpu.memory_space<any>>) target(%64 : memref<1x128xf32, #tpu.memory_space<vmem>>) target_semaphore(%66 : memref<!tpu.dma_semaphore, #tpu.memory_space<semaphore_mem>>)
      %c5_i32 = arith.constant 5 : i32
      %c0_50 = arith.constant 0 : index
      %67 = arith.index_cast %c5_i32 : i32 to index
      %68 = memref.load %arg1[%c0_50, %67] : memref<2x8xi32, #tpu.memory_space<smem>>
      %c0_i32_51 = arith.constant 0 : i32
      %69 = arith.maxsi %68, %c0_i32_51 : i32
      %c63_i32_52 = arith.constant 63 : i32
      %70 = arith.minsi %69, %c63_i32_52 : i32
      %c0_i32_53 = arith.constant 0 : i32
      %c0_i32_54 = arith.constant 0 : i32
      %c0_i32_55 = arith.constant 0 : i32
      %71 = tpu.memref_slice %arg2[%70, %c0_i32_55] : memref<64x128xf32, #tpu.memory_space<any>> -> memref<1x128xf32, #tpu.memory_space<any>>
      %c0_i32_56 = arith.constant 0 : i32
      %72 = tpu.memref_slice %arg5[%c0_i32_53, %c5_i32, %c0_i32_56] : memref<2x8x128xf32, #tpu.memory_space<vmem>> -> memref<1x1x128xf32, #tpu.memory_space<vmem>>
      %73 = tpu.memref_squeeze %72 : memref<1x1x128xf32, #tpu.memory_space<vmem>> -> memref<1x128xf32, #tpu.memory_space<vmem>>
      %74 = tpu.memref_slice %arg6[%c0_i32_54] : memref<2x!tpu.dma_semaphore, #tpu.memory_space<semaphore_mem>> -> memref<1x!tpu.dma_semaphore, #tpu.memory_space<semaphore_mem>>
      %75 = tpu.memref_squeeze %74 : memref<1x!tpu.dma_semaphore, #tpu.memory_space<semaphore_mem>> -> memref<!tpu.dma_semaphore, #tpu.memory_space<semaphore_mem>>
      tpu.enqueue_dma source(%71 : memref<1x128xf32, #tpu.memory_space<any>>) target(%73 : memref<1x128xf32, #tpu.memory_space<vmem>>) target_semaphore(%75 : memref<!tpu.dma_semaphore, #tpu.memory_space<semaphore_mem>>)
      %c6_i32 = arith.constant 6 : i32
      %c0_57 = arith.constant 0 : index
      %76 = arith.index_cast %c6_i32 : i32 to index
      %77 = memref.load %arg1[%c0_57, %76] : memref<2x8xi32, #tpu.memory_space<smem>>
      %c0_i32_58 = arith.constant 0 : i32
      %78 = arith.maxsi %77, %c0_i32_58 : i32
      %c63_i32_59 = arith.constant 63 : i32
      %79 = arith.minsi %78, %c63_i32_59 : i32
      %c0_i32_60 = arith.constant 0 : i32
      %c0_i32_61 = arith.constant 0 : i32
      %c0_i32_62 = arith.constant 0 : i32
      %80 = tpu.memref_slice %arg2[%79, %c0_i32_62] : memref<64x128xf32, #tpu.memory_space<any>> -> memref<1x128xf32, #tpu.memory_space<any>>
      %c0_i32_63 = arith.constant 0 : i32
      %81 = tpu.memref_slice %arg5[%c0_i32_60, %c6_i32, %c0_i32_63] : memref<2x8x128xf32, #tpu.memory_space<vmem>> -> memref<1x1x128xf32, #tpu.memory_space<vmem>>
      %82 = tpu.memref_squeeze %81 : memref<1x1x128xf32, #tpu.memory_space<vmem>> -> memref<1x128xf32, #tpu.memory_space<vmem>>
      %83 = tpu.memref_slice %arg6[%c0_i32_61] : memref<2x!tpu.dma_semaphore, #tpu.memory_space<semaphore_mem>> -> memref<1x!tpu.dma_semaphore, #tpu.memory_space<semaphore_mem>>
      %84 = tpu.memref_squeeze %83 : memref<1x!tpu.dma_semaphore, #tpu.memory_space<semaphore_mem>> -> memref<!tpu.dma_semaphore, #tpu.memory_space<semaphore_mem>>
      tpu.enqueue_dma source(%80 : memref<1x128xf32, #tpu.memory_space<any>>) target(%82 : memref<1x128xf32, #tpu.memory_space<vmem>>) target_semaphore(%84 : memref<!tpu.dma_semaphore, #tpu.memory_space<semaphore_mem>>)
      %c7_i32 = arith.constant 7 : i32
      %c0_64 = arith.constant 0 : index
      %85 = arith.index_cast %c7_i32 : i32 to index
      %86 = memref.load %arg1[%c0_64, %85] : memref<2x8xi32, #tpu.memory_space<smem>>
      %c0_i32_65 = arith.constant 0 : i32
      %87 = arith.maxsi %86, %c0_i32_65 : i32
      %c63_i32_66 = arith.constant 63 : i32
      %88 = arith.minsi %87, %c63_i32_66 : i32
      %c0_i32_67 = arith.constant 0 : i32
      %c0_i32_68 = arith.constant 0 : i32
      %c0_i32_69 = arith.constant 0 : i32
      %89 = tpu.memref_slice %arg2[%88, %c0_i32_69] : memref<64x128xf32, #tpu.memory_space<any>> -> memref<1x128xf32, #tpu.memory_space<any>>
      %c0_i32_70 = arith.constant 0 : i32
      %90 = tpu.memref_slice %arg5[%c0_i32_67, %c7_i32, %c0_i32_70] : memref<2x8x128xf32, #tpu.memory_space<vmem>> -> memref<1x1x128xf32, #tpu.memory_space<vmem>>
      %91 = tpu.memref_squeeze %90 : memref<1x1x128xf32, #tpu.memory_space<vmem>> -> memref<1x128xf32, #tpu.memory_space<vmem>>
      %92 = tpu.memref_slice %arg6[%c0_i32_68] : memref<2x!tpu.dma_semaphore, #tpu.memory_space<semaphore_mem>> -> memref<1x!tpu.dma_semaphore, #tpu.memory_space<semaphore_mem>>
      %93 = tpu.memref_squeeze %92 : memref<1x!tpu.dma_semaphore, #tpu.memory_space<semaphore_mem>> -> memref<!tpu.dma_semaphore, #tpu.memory_space<semaphore_mem>>
      tpu.enqueue_dma source(%89 : memref<1x128xf32, #tpu.memory_space<any>>) target(%91 : memref<1x128xf32, #tpu.memory_space<vmem>>) target_semaphore(%93 : memref<!tpu.dma_semaphore, #tpu.memory_space<semaphore_mem>>)
      %c8_i32 = arith.constant 8 : i32
    } else {
    }
    %c1_i32 = arith.constant 1 : i32
    %3 = arith.addi %arg0, %c1_i32 : i32
    %c2_i32 = arith.constant 2 : i32
    %4 = arith.cmpi slt, %3, %c2_i32 : i32
    %5 = arith.extui %4 : i1 to i32
    %c0_i32_1 = arith.constant 0 : i32
    %6 = arith.cmpi ne, %5, %c0_i32_1 : i32
    scf.if %6 {
      %c1_i32_13 = arith.constant 1 : i32
      %22 = arith.addi %arg0, %c1_i32_13 : i32
      %c1_i32_14 = arith.constant 1 : i32
      %23 = arith.addi %arg0, %c1_i32_14 : i32
      %c1_i32_15 = arith.constant 1 : i32
      %24 = arith.andi %23, %c1_i32_15 : i32
      %c0_i32_16 = arith.constant 0 : i32
      %25 = arith.index_cast %22 : i32 to index
      %26 = arith.index_cast %c0_i32_16 : i32 to index
      %27 = memref.load %arg1[%25, %26] : memref<2x8xi32, #tpu.memory_space<smem>>
      %c0_i32_17 = arith.constant 0 : i32
      %28 = arith.maxsi %27, %c0_i32_17 : i32
      %c63_i32 = arith.constant 63 : i32
      %29 = arith.minsi %28, %c63_i32 : i32
      %c0_i32_18 = arith.constant 0 : i32
      %30 = tpu.memref_slice %arg2[%29, %c0_i32_18] : memref<64x128xf32, #tpu.memory_space<any>> -> memref<1x128xf32, #tpu.memory_space<any>>
      %c0_i32_19 = arith.constant 0 : i32
      %31 = tpu.memref_slice %arg5[%24, %c0_i32_16, %c0_i32_19] : memref<2x8x128xf32, #tpu.memory_space<vmem>> -> memref<1x1x128xf32, #tpu.memory_space<vmem>>
      %32 = tpu.memref_squeeze %31 : memref<1x1x128xf32, #tpu.memory_space<vmem>> -> memref<1x128xf32, #tpu.memory_space<vmem>>
      %33 = tpu.memref_slice %arg6[%24] : memref<2x!tpu.dma_semaphore, #tpu.memory_space<semaphore_mem>> -> memref<1x!tpu.dma_semaphore, #tpu.memory_space<semaphore_mem>>
      %34 = tpu.memref_squeeze %33 : memref<1x!tpu.dma_semaphore, #tpu.memory_space<semaphore_mem>> -> memref<!tpu.dma_semaphore, #tpu.memory_space<semaphore_mem>>
      tpu.enqueue_dma source(%30 : memref<1x128xf32, #tpu.memory_space<any>>) target(%32 : memref<1x128xf32, #tpu.memory_space<vmem>>) target_semaphore(%34 : memref<!tpu.dma_semaphore, #tpu.memory_space<semaphore_mem>>)
      %c1_i32_20 = arith.constant 1 : i32
      %35 = arith.index_cast %22 : i32 to index
      %36 = arith.index_cast %c1_i32_20 : i32 to index
      %37 = memref.load %arg1[%35, %36] : memref<2x8xi32, #tpu.memory_space<smem>>
      %c0_i32_21 = arith.constant 0 : i32
      %38 = arith.maxsi %37, %c0_i32_21 : i32
      %c63_i32_22 = arith.constant 63 : i32
      %39 = arith.minsi %38, %c63_i32_22 : i32
      %c0_i32_23 = arith.constant 0 : i32
      %40 = tpu.memref_slice %arg2[%39, %c0_i32_23] : memref<64x128xf32, #tpu.memory_space<any>> -> memref<1x128xf32, #tpu.memory_space<any>>
      %c0_i32_24 = arith.constant 0 : i32
      %41 = tpu.memref_slice %arg5[%24, %c1_i32_20, %c0_i32_24] : memref<2x8x128xf32, #tpu.memory_space<vmem>> -> memref<1x1x128xf32, #tpu.memory_space<vmem>>
      %42 = tpu.memref_squeeze %41 : memref<1x1x128xf32, #tpu.memory_space<vmem>> -> memref<1x128xf32, #tpu.memory_space<vmem>>
      %43 = tpu.memref_slice %arg6[%24] : memref<2x!tpu.dma_semaphore, #tpu.memory_space<semaphore_mem>> -> memref<1x!tpu.dma_semaphore, #tpu.memory_space<semaphore_mem>>
      %44 = tpu.memref_squeeze %43 : memref<1x!tpu.dma_semaphore, #tpu.memory_space<semaphore_mem>> -> memref<!tpu.dma_semaphore, #tpu.memory_space<semaphore_mem>>
      tpu.enqueue_dma source(%40 : memref<1x128xf32, #tpu.memory_space<any>>) target(%42 : memref<1x128xf32, #tpu.memory_space<vmem>>) target_semaphore(%44 : memref<!tpu.dma_semaphore, #tpu.memory_space<semaphore_mem>>)
      %c2_i32_25 = arith.constant 2 : i32
      %45 = arith.index_cast %22 : i32 to index
      %46 = arith.index_cast %c2_i32_25 : i32 to index
      %47 = memref.load %arg1[%45, %46] : memref<2x8xi32, #tpu.memory_space<smem>>
      %c0_i32_26 = arith.constant 0 : i32
      %48 = arith.maxsi %47, %c0_i32_26 : i32
      %c63_i32_27 = arith.constant 63 : i32
      %49 = arith.minsi %48, %c63_i32_27 : i32
      %c0_i32_28 = arith.constant 0 : i32
      %50 = tpu.memref_slice %arg2[%49, %c0_i32_28] : memref<64x128xf32, #tpu.memory_space<any>> -> memref<1x128xf32, #tpu.memory_space<any>>
      %c0_i32_29 = arith.constant 0 : i32
      %51 = tpu.memref_slice %arg5[%24, %c2_i32_25, %c0_i32_29] : memref<2x8x128xf32, #tpu.memory_space<vmem>> -> memref<1x1x128xf32, #tpu.memory_space<vmem>>
      %52 = tpu.memref_squeeze %51 : memref<1x1x128xf32, #tpu.memory_space<vmem>> -> memref<1x128xf32, #tpu.memory_space<vmem>>
      %53 = tpu.memref_slice %arg6[%24] : memref<2x!tpu.dma_semaphore, #tpu.memory_space<semaphore_mem>> -> memref<1x!tpu.dma_semaphore, #tpu.memory_space<semaphore_mem>>
      %54 = tpu.memref_squeeze %53 : memref<1x!tpu.dma_semaphore, #tpu.memory_space<semaphore_mem>> -> memref<!tpu.dma_semaphore, #tpu.memory_space<semaphore_mem>>
      tpu.enqueue_dma source(%50 : memref<1x128xf32, #tpu.memory_space<any>>) target(%52 : memref<1x128xf32, #tpu.memory_space<vmem>>) target_semaphore(%54 : memref<!tpu.dma_semaphore, #tpu.memory_space<semaphore_mem>>)
      %c3_i32 = arith.constant 3 : i32
      %55 = arith.index_cast %22 : i32 to index
      %56 = arith.index_cast %c3_i32 : i32 to index
      %57 = memref.load %arg1[%55, %56] : memref<2x8xi32, #tpu.memory_space<smem>>
      %c0_i32_30 = arith.constant 0 : i32
      %58 = arith.maxsi %57, %c0_i32_30 : i32
      %c63_i32_31 = arith.constant 63 : i32
      %59 = arith.minsi %58, %c63_i32_31 : i32
      %c0_i32_32 = arith.constant 0 : i32
      %60 = tpu.memref_slice %arg2[%59, %c0_i32_32] : memref<64x128xf32, #tpu.memory_space<any>> -> memref<1x128xf32, #tpu.memory_space<any>>
      %c0_i32_33 = arith.constant 0 : i32
      %61 = tpu.memref_slice %arg5[%24, %c3_i32, %c0_i32_33] : memref<2x8x128xf32, #tpu.memory_space<vmem>> -> memref<1x1x128xf32, #tpu.memory_space<vmem>>
      %62 = tpu.memref_squeeze %61 : memref<1x1x128xf32, #tpu.memory_space<vmem>> -> memref<1x128xf32, #tpu.memory_space<vmem>>
      %63 = tpu.memref_slice %arg6[%24] : memref<2x!tpu.dma_semaphore, #tpu.memory_space<semaphore_mem>> -> memref<1x!tpu.dma_semaphore, #tpu.memory_space<semaphore_mem>>
      %64 = tpu.memref_squeeze %63 : memref<1x!tpu.dma_semaphore, #tpu.memory_space<semaphore_mem>> -> memref<!tpu.dma_semaphore, #tpu.memory_space<semaphore_mem>>
      tpu.enqueue_dma source(%60 : memref<1x128xf32, #tpu.memory_space<any>>) target(%62 : memref<1x128xf32, #tpu.memory_space<vmem>>) target_semaphore(%64 : memref<!tpu.dma_semaphore, #tpu.memory_space<semaphore_mem>>)
      %c4_i32 = arith.constant 4 : i32
      %65 = arith.index_cast %22 : i32 to index
      %66 = arith.index_cast %c4_i32 : i32 to index
      %67 = memref.load %arg1[%65, %66] : memref<2x8xi32, #tpu.memory_space<smem>>
      %c0_i32_34 = arith.constant 0 : i32
      %68 = arith.maxsi %67, %c0_i32_34 : i32
      %c63_i32_35 = arith.constant 63 : i32
      %69 = arith.minsi %68, %c63_i32_35 : i32
      %c0_i32_36 = arith.constant 0 : i32
      %70 = tpu.memref_slice %arg2[%69, %c0_i32_36] : memref<64x128xf32, #tpu.memory_space<any>> -> memref<1x128xf32, #tpu.memory_space<any>>
      %c0_i32_37 = arith.constant 0 : i32
      %71 = tpu.memref_slice %arg5[%24, %c4_i32, %c0_i32_37] : memref<2x8x128xf32, #tpu.memory_space<vmem>> -> memref<1x1x128xf32, #tpu.memory_space<vmem>>
      %72 = tpu.memref_squeeze %71 : memref<1x1x128xf32, #tpu.memory_space<vmem>> -> memref<1x128xf32, #tpu.memory_space<vmem>>
      %73 = tpu.memref_slice %arg6[%24] : memref<2x!tpu.dma_semaphore, #tpu.memory_space<semaphore_mem>> -> memref<1x!tpu.dma_semaphore, #tpu.memory_space<semaphore_mem>>
      %74 = tpu.memref_squeeze %73 : memref<1x!tpu.dma_semaphore, #tpu.memory_space<semaphore_mem>> -> memref<!tpu.dma_semaphore, #tpu.memory_space<semaphore_mem>>
      tpu.enqueue_dma source(%70 : memref<1x128xf32, #tpu.memory_space<any>>) target(%72 : memref<1x128xf32, #tpu.memory_space<vmem>>) target_semaphore(%74 : memref<!tpu.dma_semaphore, #tpu.memory_space<semaphore_mem>>)
      %c5_i32 = arith.constant 5 : i32
      %75 = arith.index_cast %22 : i32 to index
      %76 = arith.index_cast %c5_i32 : i32 to index
      %77 = memref.load %arg1[%75, %76] : memref<2x8xi32, #tpu.memory_space<smem>>
      %c0_i32_38 = arith.constant 0 : i32
      %78 = arith.maxsi %77, %c0_i32_38 : i32
      %c63_i32_39 = arith.constant 63 : i32
      %79 = arith.minsi %78, %c63_i32_39 : i32
      %c0_i32_40 = arith.constant 0 : i32
      %80 = tpu.memref_slice %arg2[%79, %c0_i32_40] : memref<64x128xf32, #tpu.memory_space<any>> -> memref<1x128xf32, #tpu.memory_space<any>>
      %c0_i32_41 = arith.constant 0 : i32
      %81 = tpu.memref_slice %arg5[%24, %c5_i32, %c0_i32_41] : memref<2x8x128xf32, #tpu.memory_space<vmem>> -> memref<1x1x128xf32, #tpu.memory_space<vmem>>
      %82 = tpu.memref_squeeze %81 : memref<1x1x128xf32, #tpu.memory_space<vmem>> -> memref<1x128xf32, #tpu.memory_space<vmem>>
      %83 = tpu.memref_slice %arg6[%24] : memref<2x!tpu.dma_semaphore, #tpu.memory_space<semaphore_mem>> -> memref<1x!tpu.dma_semaphore, #tpu.memory_space<semaphore_mem>>
      %84 = tpu.memref_squeeze %83 : memref<1x!tpu.dma_semaphore, #tpu.memory_space<semaphore_mem>> -> memref<!tpu.dma_semaphore, #tpu.memory_space<semaphore_mem>>
      tpu.enqueue_dma source(%80 : memref<1x128xf32, #tpu.memory_space<any>>) target(%82 : memref<1x128xf32, #tpu.memory_space<vmem>>) target_semaphore(%84 : memref<!tpu.dma_semaphore, #tpu.memory_space<semaphore_mem>>)
      %c6_i32 = arith.constant 6 : i32
      %85 = arith.index_cast %22 : i32 to index
      %86 = arith.index_cast %c6_i32 : i32 to index
      %87 = memref.load %arg1[%85, %86] : memref<2x8xi32, #tpu.memory_space<smem>>
      %c0_i32_42 = arith.constant 0 : i32
      %88 = arith.maxsi %87, %c0_i32_42 : i32
      %c63_i32_43 = arith.constant 63 : i32
      %89 = arith.minsi %88, %c63_i32_43 : i32
      %c0_i32_44 = arith.constant 0 : i32
      %90 = tpu.memref_slice %arg2[%89, %c0_i32_44] : memref<64x128xf32, #tpu.memory_space<any>> -> memref<1x128xf32, #tpu.memory_space<any>>
      %c0_i32_45 = arith.constant 0 : i32
      %91 = tpu.memref_slice %arg5[%24, %c6_i32, %c0_i32_45] : memref<2x8x128xf32, #tpu.memory_space<vmem>> -> memref<1x1x128xf32, #tpu.memory_space<vmem>>
      %92 = tpu.memref_squeeze %91 : memref<1x1x128xf32, #tpu.memory_space<vmem>> -> memref<1x128xf32, #tpu.memory_space<vmem>>
      %93 = tpu.memref_slice %arg6[%24] : memref<2x!tpu.dma_semaphore, #tpu.memory_space<semaphore_mem>> -> memref<1x!tpu.dma_semaphore, #tpu.memory_space<semaphore_mem>>
      %94 = tpu.memref_squeeze %93 : memref<1x!tpu.dma_semaphore, #tpu.memory_space<semaphore_mem>> -> memref<!tpu.dma_semaphore, #tpu.memory_space<semaphore_mem>>
      tpu.enqueue_dma source(%90 : memref<1x128xf32, #tpu.memory_space<any>>) target(%92 : memref<1x128xf32, #tpu.memory_space<vmem>>) target_semaphore(%94 : memref<!tpu.dma_semaphore, #tpu.memory_space<semaphore_mem>>)
      %c7_i32 = arith.constant 7 : i32
      %95 = arith.index_cast %22 : i32 to index
      %96 = arith.index_cast %c7_i32 : i32 to index
      %97 = memref.load %arg1[%95, %96] : memref<2x8xi32, #tpu.memory_space<smem>>
      %c0_i32_46 = arith.constant 0 : i32
      %98 = arith.maxsi %97, %c0_i32_46 : i32
      %c63_i32_47 = arith.constant 63 : i32
      %99 = arith.minsi %98, %c63_i32_47 : i32
      %c0_i32_48 = arith.constant 0 : i32
      %100 = tpu.memref_slice %arg2[%99, %c0_i32_48] : memref<64x128xf32, #tpu.memory_space<any>> -> memref<1x128xf32, #tpu.memory_space<any>>
      %c0_i32_49 = arith.constant 0 : i32
      %101 = tpu.memref_slice %arg5[%24, %c7_i32, %c0_i32_49] : memref<2x8x128xf32, #tpu.memory_space<vmem>> -> memref<1x1x128xf32, #tpu.memory_space<vmem>>
      %102 = tpu.memref_squeeze %101 : memref<1x1x128xf32, #tpu.memory_space<vmem>> -> memref<1x128xf32, #tpu.memory_space<vmem>>
      %103 = tpu.memref_slice %arg6[%24] : memref<2x!tpu.dma_semaphore, #tpu.memory_space<semaphore_mem>> -> memref<1x!tpu.dma_semaphore, #tpu.memory_space<semaphore_mem>>
      %104 = tpu.memref_squeeze %103 : memref<1x!tpu.dma_semaphore, #tpu.memory_space<semaphore_mem>> -> memref<!tpu.dma_semaphore, #tpu.memory_space<semaphore_mem>>
      tpu.enqueue_dma source(%100 : memref<1x128xf32, #tpu.memory_space<any>>) target(%102 : memref<1x128xf32, #tpu.memory_space<vmem>>) target_semaphore(%104 : memref<!tpu.dma_semaphore, #tpu.memory_space<semaphore_mem>>)
      %c8_i32 = arith.constant 8 : i32
    } else {
    }
    %c1_i32_2 = arith.constant 1 : i32
    %7 = arith.andi %arg0, %c1_i32_2 : i32
    %c0_i32_3 = arith.constant 0 : i32
    %c0_i32_4 = arith.constant 0 : i32
    %8 = tpu.memref_slice %arg5[%7, %c0_i32_3, %c0_i32_4] : memref<2x8x128xf32, #tpu.memory_space<vmem>> -> memref<1x8x128xf32, #tpu.memory_space<vmem>>
    %9 = tpu.memref_squeeze %8 : memref<1x8x128xf32, #tpu.memory_space<vmem>> -> memref<8x128xf32, #tpu.memory_space<vmem>>
    %c0_i32_5 = arith.constant 0 : i32
    %c0_i32_6 = arith.constant 0 : i32
    %10 = tpu.memref_slice %arg5[%7, %c0_i32_5, %c0_i32_6] : memref<2x8x128xf32, #tpu.memory_space<vmem>> -> memref<1x8x128xf32, #tpu.memory_space<vmem>>
    %11 = tpu.memref_squeeze %10 : memref<1x8x128xf32, #tpu.memory_space<vmem>> -> memref<8x128xf32, #tpu.memory_space<vmem>>
    %12 = tpu.memref_slice %arg6[%7] : memref<2x!tpu.dma_semaphore, #tpu.memory_space<semaphore_mem>> -> memref<1x!tpu.dma_semaphore, #tpu.memory_space<semaphore_mem>>
    %13 = tpu.memref_squeeze %12 : memref<1x!tpu.dma_semaphore, #tpu.memory_space<semaphore_mem>> -> memref<!tpu.dma_semaphore, #tpu.memory_space<semaphore_mem>>
    tpu.wait_dma2 semaphore(%13 : memref<!tpu.dma_semaphore, #tpu.memory_space<semaphore_mem>>) src(%9 : memref<8x128xf32, #tpu.memory_space<vmem>>) dst(%11 : memref<8x128xf32, #tpu.memory_space<vmem>>)
    %14 = arith.index_cast %7 : i32 to index
    %c0 = arith.constant 0 : index
    %c0_7 = arith.constant 0 : index
    %15 = vector.load %arg5[%14, %c0, %c0_7] : memref<2x8x128xf32, #tpu.memory_space<vmem>>, vector<1x8x128xf32>
    %16 = vector.shape_cast %15 : vector<1x8x128xf32> to vector<8x128xf32>
    %c0_8 = arith.constant 0 : index
    %c0_9 = arith.constant 0 : index
    %17 = vector.load %arg3[%c0_8, %c0_9] : memref<8x128xf32, #tpu.memory_space<vmem>>, vector<8x128xf32>
    %18 = arith.addf %16, %17 : vector<8x128xf32>
    %c0_10 = arith.constant 0 : index
    %c0_11 = arith.constant 0 : index
    %c0_12 = arith.constant 0 : index
    %19 = vector.load %arg4[%c0_10, %c0_11, %c0_12] : memref<1x8x128xf32, #tpu.memory_space<vmem>>, vector<1x8x128xf32>
    %20 = vector.shape_cast %19 : vector<1x8x128xf32> to vector<8x128xf32>
    %21 = vector.shape_cast %18 : vector<8x128xf32> to vector<1x8x128xf32>
    tpu.vector_store %arg4[%c0_10, %c0_11, %c0_12], %21 {strides = array<i32>} : memref<1x8x128xf32, #tpu.memory_space<vmem>>, vector<1x8x128xf32>,
    return
  }
  func.func @transform_1(%arg0: i32, %arg1: memref<2x8xi32, #tpu.memory_space<smem>>) -> (i32, i32) {
    %c0_i32 = arith.constant 0 : i32
    %c0_i32_0 = arith.constant 0 : i32
    %c0_i32_1 = arith.constant 0 : i32
    return %c0_i32, %c0_i32_0 : i32, i32
  }
  func.func @transform_2(%arg0: i32, %arg1: memref<2x8xi32, #tpu.memory_space<smem>>) -> (i32, i32, i32) {
    %c0_i32 = arith.constant 0 : i32
    %c0_i32_0 = arith.constant 0 : i32
    %c0_i32_1 = arith.constant 0 : i32
    return %arg0, %c0_i32, %c0_i32_0 : i32, i32, i32
  }
}

</mosaic_0001>

<llo_original>
// kernel: tpu_custom_call.1
$region0: #{tpu_custom_call.1}
  #allocation0 [shape = 'u32[]', space=smem, size = 0x4, offset = 0x4, fixed_abs, tag = 'smem constant byte address 0x4 - core index']
  #allocation1 [shape = 'u32[72,128]{1,0:T(1,128)}', space=vmem, size = 0x9000, scoped, tag = 'internal scratch']
  #allocation2 [shape = 'f32[2,8,128]{2,1,0:T(8,128)}', space=vmem, size = 0x2000, scoped, tag = 'scratch operand']
  #allocation3 [shape = 's32[2]{0}', space=sflag, size = 0x8, scoped, tag = 'scratch operand']
  #allocation4 [shape = 's32[1]{0}', space=sflag, size = 0x4, scoped, tag = 'scoped memory for tpu_custom_call.1']
  #allocation5 [shape = 'u8[1024]{0}', space=smem, size = 0x400, scoped, tag = 'prefetched SMEM operand 0']
  #allocation10 [shape = 's32[]', space=sflag, size = 0x4, offset = 0, fixed_abs, tag = 'sflag constant byte address 0x0 - dummy sync flag']
  #allocation11 [shape = 's32[]', space=sflag, size = 0x4, offset = 0, fixed_abs, tag = 'sflag constant byte address 0x0 - dummy sync flag']
  #allocation12 [shape = 'u32[]', space=smem, size = 0x4, offset = 0x44, fixed_abs, tag = 'smem constant byte address 0x44 - assertion arg 0']
  #allocation13 [shape = 'u32[]', space=smem, size = 0x4, offset = 0x48, fixed_abs, tag = 'smem constant byte address 0x48 - assertion arg 1']
  #allocation14 [shape = 's32[]', space=sflag, size = 0x4, offset = 0, fixed_abs, tag = 'sflag constant byte address 0x0 - dummy sync flag']
  #allocation15 [shape = 's32[]', space=sflag, size = 0x4, offset = 0, fixed_abs, tag = 'sflag constant byte address 0x0 - dummy sync flag']
  #allocation16 [shape = 's32[]', space=sflag, size = 0x4, offset = 0, fixed_abs, tag = 'sflag constant byte address 0x0 - dummy sync flag']
  #allocation17 [shape = 's32[]', space=sflag, size = 0x4, offset = 0, fixed_abs, tag = 'sflag constant byte address 0x0 - dummy sync flag']
  #allocation18 [shape = 's32[]', space=sflag, size = 0x4, offset = 0, fixed_abs, tag = 'sflag constant byte address 0x0 - dummy sync flag']
  #allocation19 [shape = 's32[]', space=sflag, size = 0x4, offset = 0, fixed_abs, tag = 'sflag constant byte address 0x0 - dummy sync flag']
  #allocation20 [shape = 's32[]', space=sflag, size = 0x4, offset = 0, fixed_abs, tag = 'sflag constant byte address 0x0 - dummy sync flag']
  #allocation21 [shape = 's32[]', space=sflag, size = 0x4, offset = 0, fixed_abs, tag = 'sflag constant byte address 0x0 - dummy sync flag']
  #allocation22 [shape = 's32[]', space=sflag, size = 0x4, offset = 0, fixed_abs, tag = 'sflag constant byte address 0x0 - dummy sync flag']
  #allocation23 [shape = 's32[]', space=sflag, size = 0x4, offset = 0, fixed_abs, tag = 'sflag constant byte address 0x0 - dummy sync flag']
  #allocation24 [shape = 's32[]', space=sflag, size = 0x4, offset = 0, fixed_abs, tag = 'sflag constant byte address 0x0 - dummy sync flag']
  #allocation25 [shape = 's32[]', space=sflag, size = 0x4, offset = 0, fixed_abs, tag = 'sflag constant byte address 0x0 - dummy sync flag']
  #allocation26 [shape = 's32[]', space=sflag, size = 0x4, offset = 0, fixed_abs, tag = 'sflag constant byte address 0x0 - dummy sync flag']
  #allocation27 [shape = 's32[]', space=sflag, size = 0x4, offset = 0, fixed_abs, tag = 'sflag constant byte address 0x0 - dummy sync flag']
  #allocation28 [shape = 's32[]', space=sflag, size = 0x4, offset = 0, fixed_abs, tag = 'sflag constant byte address 0x0 - dummy sync flag']
  #allocation29 [shape = 's32[]', space=sflag, size = 0x4, offset = 0, fixed_abs, tag = 'sflag constant byte address 0x0 - dummy sync flag']
  #allocation30 [shape = 's32[]', space=sflag, size = 0x4, offset = 0, fixed_abs, tag = 'sflag constant byte address 0x0 - dummy sync flag']
  #allocation31 [shape = 's32[]', space=sflag, size = 0x4, offset = 0, fixed_abs, tag = 'sflag constant byte address 0x0 - dummy sync flag']
  #allocation32 [shape = 's32[]', space=sflag, size = 0x4, offset = 0, fixed_abs, tag = 'sflag constant byte address 0x0 - dummy sync flag']
  #allocation33 [shape = 's32[]', space=sflag, size = 0x4, offset = 0, fixed_abs, tag = 'sflag constant byte address 0x0 - dummy sync flag']
  #allocation34 [shape = 's32[]', space=sflag, size = 0x4, offset = 0, fixed_abs, tag = 'sflag constant byte address 0x0 - dummy sync flag']
  #allocation35 [shape = 's32[]', space=sflag, size = 0x4, offset = 0, fixed_abs, tag = 'sflag constant byte address 0x0 - dummy sync flag']
  #allocation36 [shape = 's32[]', space=sflag, size = 0x4, offset = 0, fixed_abs, tag = 'sflag constant byte address 0x0 - dummy sync flag']
  #allocation37 [shape = 's32[]', space=sflag, size = 0x4, offset = 0, fixed_abs, tag = 'sflag constant byte address 0x0 - dummy sync flag']
  #allocation38 [shape = 's32[]', space=sflag, size = 0x4, offset = 0, fixed_abs, tag = 'sflag constant byte address 0x0 - dummy sync flag']
  #allocation39 [shape = 's32[]', space=sflag, size = 0x4, offset = 0, fixed_abs, tag = 'sflag constant byte address 0x0 - dummy sync flag']
  #allocation40 [shape = 's32[]', space=sflag, size = 0x4, offset = 0, fixed_abs, tag = 'sflag constant byte address 0x0 - dummy sync flag']
  #allocation41 [shape = 's32[]', space=sflag, size = 0x4, offset = 0, fixed_abs, tag = 'sflag constant byte address 0x0 - dummy sync flag']
  #allocation42 [shape = 's32[]', space=sflag, size = 0x4, offset = 0, fixed_abs, tag = 'sflag constant byte address 0x0 - dummy sync flag']
  #allocation43 [shape = 's32[]', space=sflag, size = 0x4, offset = 0, fixed_abs, tag = 'sflag constant byte address 0x0 - dummy sync flag']
  %s0 = inlined_call_operand.hbm [shape: s32[2,8], index: 0, kind: input, shape index: {}]
  %s1 = inlined_call_operand.hbm [shape: f32[64,128], index: 1, kind: input, shape index: {}]
  %s2 = inlined_call_operand.hbm [shape: f32[8,128], index: 2, kind: input, shape index: {}]
  %s3 = inlined_call_operand.hbm [shape: f32[2,8,128], index: 3, kind: output, shape index: {}]
  %s4 = sld [smem:[#allocation0]]
  $region113: #{tpu_custom_call.1} parent=0
    _
  %s6 = ssub.s32 1, %s4
  %s7 = scalar_select 0, %s6, %s4
  %s9 = sshll.u32 %s0, 4
  %s10 = int_to_ptr.hbm [resolvable:$true] %s9
  %12 = dma.hbm_to_smem %s10, 32, [#allocation5], [#allocation4]
  %14 = dma.done [#allocation4], 32
  %15 = sfence
  $region1: #{tpu_custom_call.1} parent=0
    #allocation6 [shape = 'u8[4096]{0}', space=vmem, size = 0x1000, scoped, tag = 'input window, operand 2, single buffered']
    #allocation7 [shape = 's32[2]{0}', space=sflag, size = 0x8, scoped, tag = 'scoped memory for tpu_custom_call.1']
    #allocation8 [shape = 's32[2]{0}', space=sflag, size = 0x8, scoped, tag = 'scoped memory for tpu_custom_call.1']
    #allocation9 [shape = 'u8[8192]{0}', space=vmem, size = 0x2000, scoped, tag = 'output window, operand 0']
    %16 = vsyncpa [#allocation7], 0
    %17 = vsyncpa [#allocation8], 0
    %s18 = scalar_lea.sflag [#allocation8], 1
    %19 = vsyncpa %s18, 0
    loop: start=0, step=1, limit=4
    $region2: #{tpu_custom_call.1} parent=1 // loop_pre_header
      _
    $region3: #{tpu_custom_call.1} parent=1 // loop_header
      %s21 = sphi 0, %s25
      %p22 = scmp.ge.s32.totalorder %s21, 4
      %s29 = sphi 0, %s29
      %s31 = sphi 0, %s29
      %s32 = sphi 0, %s31
      %s46 = sphi 0, %s32
      %s52 = sphi 0, %s54
      %s55 = sphi 0, %s52
      %s56 = sphi 0, %s55
      %s72 = sphi 0, %s56
    $region4: #{tpu_custom_call.1} parent=1 // loop_header_branch
      %24 = sbr.rel (%p22) target = $region8
    $region5: #{tpu_custom_call.1} parent=1 // loop_body
      %s26 = ssub.s32 %s21, 1
      %s27 = ssub.s32 %s21, 2
      %s28 = sadd.s32 %s21, 1
      %s30 = sadd.s32 %s29, 1
      %p33 = scmp.eq.s32.totalorder %s21, 1
      %p34 = scmp.ne.s32.totalorder %s29, %s31
      %p35 = scmp.eq.s32.totalorder %s21, 0
      %p36 = por %p34, %p35
      %p37 = scmp.ne.s32.totalorder %s29, %s31
      %p38 = scmp.eq.s32.totalorder %s26, 1
      %p39 = por %p37, %p38
      %p40 = scmp.ne.s32.totalorder %s31, %s32
      %p41 = scmp.eq.s32.totalorder %s26, 0
      %p42 = por %p40, %p41
      %p43 = scmp.ne.s32.totalorder %s31, %s32
      %p44 = scmp.eq.s32.totalorder %s27, 1
      %p45 = por %p43, %p44
      %p47 = scmp.ne.s32.totalorder %s32, %s46
      %p48 = scmp.eq.s32.totalorder %s27, 0
      %p49 = por %p47, %p48
      %s50 = ssub.s32 %s21, %s28
      %p51 = scmp.eq.s32.totalorder %s50, 0
      %s53 = sadd.s32 %s52, 1
      %s54 = scalar_select %p51, %s52, %s53
      %p57 = pneg %p51
      %p58 = scmp.eq.s32.totalorder %s21, 1
      %p59 = por %p57, %p58
      %p60 = scmp.ne.s32.totalorder %s52, %s55
      %p61 = scmp.eq.s32.totalorder %s21, 0
      %p62 = por %p60, %p61
      %p63 = scmp.ne.s32.totalorder %s52, %s55
      %p64 = scmp.eq.s32.totalorder %s26, 1
      %p65 = por %p63, %p64
      %p66 = scmp.ne.s32.totalorder %s55, %s56
      %p67 = scmp.eq.s32.totalorder %s26, 0
      %p68 = por %p66, %p67
      %p69 = scmp.ne.s32.totalorder %s55, %s56
      %p70 = scmp.eq.s32.totalorder %s27, 1
      %p71 = por %p69, %p70
      %p73 = scmp.ne.s32.totalorder %s56, %s72
      %p74 = scmp.eq.s32.totalorder %s27, 0
      %p75 = por %p73, %p74
      %p76 = scmp.le.s32.totalorder 1, %s21
      %p77 = scmp.lt.s32.totalorder %s21, 3
      %p78 = pnand %p76, %p77
      %p79 = pneg %p78
      // Predicated region
      $region9: #{tpu_custom_call.1} parent=5 // pred_check
        _
      $region10: #{tpu_custom_call.1} parent=5 // pred_check_branch
        %81 = sbr.rel (%p78) target = $region12
      $region11: #{tpu_custom_call.1} parent=5 // pred_region
        %s82 = ssub.s32 %s21, 1
        // Predicated region
        $region13: #{tpu_custom_call.1} parent=11 // pred_check
          %p83 = pneg %p42
        $region14: #{tpu_custom_call.1} parent=11 // pred_check_branch
          %85 = sbr.rel (%p83) target = $region16
        $region15: #{tpu_custom_call.1} parent=11 // pred_region
          %87 = vsyncadd [#allocation7], 0
          %s89 = sshll.u32 %s2, 4
          %s90 = int_to_ptr.hbm [resolvable:$true] %s89
          %s91 = sshll.u32 [#allocation6], 4
          %s92 = int_to_ptr.vmem [resolvable:$true] %s91
          %94 = dma.hbm_to_vmem [thread:$0]  %s90, 128, %s92, [#allocation7]
        $region16: #{tpu_custom_call.1} parent=11 // pred_fallthru
          _
      $region12: #{tpu_custom_call.1} parent=5 // pred_fallthru
        _
      %p95 = scmp.lt.s32.totalorder %s21, 2
      // Predicated region
      $region17: #{tpu_custom_call.1} parent=5 // pred_check
        %p96 = pneg %p95
      $region18: #{tpu_custom_call.1} parent=5 // pred_check_branch
        %98 = sbr.rel (%p96) target = $region20
      $region19: #{tpu_custom_call.1} parent=5 // pred_region
        _
      $region20: #{tpu_custom_call.1} parent=5 // pred_fallthru
        _
      %p99 = scmp.le.s32.totalorder 1, %s21
      %p100 = scmp.lt.s32.totalorder %s21, 3
      %p101 = pnand %p99, %p100
      %p102 = pneg %p101
      // Predicated region
      $region21: #{tpu_custom_call.1} parent=5 // pred_check
        _
      $region22: #{tpu_custom_call.1} parent=5 // pred_check_branch
        %104 = sbr.rel (%p101) target = $region24
      $region23: #{tpu_custom_call.1} parent=5 // pred_region
        %s105 = ssub.s32 %s21, 1
        // Predicated region
        $region25: #{tpu_custom_call.1} parent=23 // pred_check
          %p106 = pneg %p42
        $region26: #{tpu_custom_call.1} parent=23 // pred_check_branch
          %108 = sbr.rel (%p106) target = $region28
        $region27: #{tpu_custom_call.1} parent=23 // pred_region
          %110 = dma.done [#allocation7], 128
        $region28: #{tpu_custom_call.1} parent=23 // pred_fallthru
          _
        %p111 = pneg %p42
        %p112 = pneg %p39
        %p113 = pneg %p68
        %p114 = pneg %p65
        %s115 = sand.u32 %s55, 1
        %s116 = scalar_lea.sflag [#allocation8], %s115
        %s117 = sand.u32 %s55, 1
        %s118 = smul.addr %s117, 8
        %s119 = scalar_lea.vmem [#allocation9], %s118
        %p120 = scmp.eq.s32.totalorder %s26, 0
        // Predicated region
        $region29: #{tpu_custom_call.1} parent=23 // pred_check
          %p121 = pneg %p120
        $region30: #{tpu_custom_call.1} parent=23 // pred_check_branch
          %123 = sbr.rel (%p121) target = $region32
        $region31: #{tpu_custom_call.1} parent=23 // pred_region
          %s124 = sld [smem:[#allocation5]]
          %p125 = scmp.gt.s32.totalorder %s124, 0
          %s126 = scalar_select %p125, %s124, 0
          %p127 = scmp.lt.s32.totalorder %s126, 63
          %s128 = scalar_select %p127, %s126, 63
          %s129 = scalar_lea.hbm %s1, %s128
          // Predicated region
          $region33: #{tpu_custom_call.1} parent=31 // pred_check
            _
          $region34: #{tpu_custom_call.1} parent=31 // pred_check_branch
            %131 = sbr.rel target = $region36
          $region35: #{tpu_custom_call.1} parent=31 // pred_region
            %132 = sst [smem:[#allocation12]] [#allocation11]
            %133 = sst [smem:[#allocation13]] [#allocation10]
          $region36: #{tpu_custom_call.1} parent=31 // pred_fallthru
            _
          %135 = shalt.err (0)
          %s137 = sshll.u32 %s129, 4
          %s138 = int_to_ptr.hbm [resolvable:$true] %s137
          %s139 = sshll.u32 [#allocation2], 4
          %s140 = int_to_ptr.vmem [resolvable:$true] %s139
          %142 = dma.hbm_to_vmem [thread:$0]  %s138, 16, %s140, [#allocation3]
          %s143 = sld [smem:[#allocation5 + $0x1]]
          %p144 = scmp.gt.s32.totalorder %s143, 0
          %s145 = scalar_select %p144, %s143, 0
          %p146 = scmp.lt.s32.totalorder %s145, 63
          %s147 = scalar_select %p146, %s145, 63
          %s148 = scalar_lea.hbm %s1, %s147
          %s149 = scalar_lea.vmem [#allocation2], 1
          // Predicated region
          $region37: #{tpu_custom_call.1} parent=31 // pred_check
            _
          $region38: #{tpu_custom_call.1} parent=31 // pred_check_branch
            %151 = sbr.rel target = $region40
          $region39: #{tpu_custom_call.1} parent=31 // pred_region
            %152 = sst [smem:[#allocation12]] [#allocation15]
            %153 = sst [smem:[#allocation13]] [#allocation14]
          $region40: #{tpu_custom_call.1} parent=31 // pred_fallthru
            _
          %155 = shalt.err (0)
          %s157 = sshll.u32 %s148, 4
          %s158 = int_to_ptr.hbm [resolvable:$true] %s157
          %s159 = sshll.u32 %s149, 4
          %s160 = int_to_ptr.vmem [resolvable:$true] %s159
          %162 = dma.hbm_to_vmem [thread:$0]  %s158, 16, %s160, [#allocation3]
          %s163 = sld [smem:[#allocation5 + $0x2]]
          %p164 = scmp.gt.s32.totalorder %s163, 0
          %s165 = scalar_select %p164, %s163, 0
          %p166 = scmp.lt.s32.totalorder %s165, 63
          %s167 = scalar_select %p166, %s165, 63
          %s168 = scalar_lea.hbm %s1, %s167
          %s169 = scalar_lea.vmem [#allocation2], 2
          // Predicated region
          $region41: #{tpu_custom_call.1} parent=31 // pred_check
            _
          $region42: #{tpu_custom_call.1} parent=31 // pred_check_branch
            %171 = sbr.rel target = $region44
          $region43: #{tpu_custom_call.1} parent=31 // pred_region
            %172 = sst [smem:[#allocation12]] [#allocation17]
            %173 = sst [smem:[#allocation13]] [#allocation16]
          $region44: #{tpu_custom_call.1} parent=31 // pred_fallthru
            _
          %175 = shalt.err (0)
          %s177 = sshll.u32 %s168, 4
          %s178 = int_to_ptr.hbm [resolvable:$true] %s177
          %s179 = sshll.u32 %s169, 4
          %s180 = int_to_ptr.vmem [resolvable:$true] %s179
          %182 = dma.hbm_to_vmem [thread:$0]  %s178, 16, %s180, [#allocation3]
          %s183 = sld [smem:[#allocation5 + $0x3]]
          %p184 = scmp.gt.s32.totalorder %s183, 0
          %s185 = scalar_select %p184, %s183, 0
          %p186 = scmp.lt.s32.totalorder %s185, 63
          %s187 = scalar_select %p186, %s185, 63
          %s188 = scalar_lea.hbm %s1, %s187
          %s189 = scalar_lea.vmem [#allocation2], 3
          // Predicated region
          $region45: #{tpu_custom_call.1} parent=31 // pred_check
            _
          $region46: #{tpu_custom_call.1} parent=31 // pred_check_branch
            %191 = sbr.rel target = $region48
          $region47: #{tpu_custom_call.1} parent=31 // pred_region
            %192 = sst [smem:[#allocation12]] [#allocation19]
            %193 = sst [smem:[#allocation13]] [#allocation18]
          $region48: #{tpu_custom_call.1} parent=31 // pred_fallthru
            _
          %195 = shalt.err (0)
          %s197 = sshll.u32 %s188, 4
          %s198 = int_to_ptr.hbm [resolvable:$true] %s197
          %s199 = sshll.u32 %s189, 4
          %s200 = int_to_ptr.vmem [resolvable:$true] %s199
          %202 = dma.hbm_to_vmem [thread:$0]  %s198, 16, %s200, [#allocation3]
          %s203 = sld [smem:[#allocation5 + $0x4]]
          %p204 = scmp.gt.s32.totalorder %s203, 0
          %s205 = scalar_select %p204, %s203, 0
          %p206 = scmp.lt.s32.totalorder %s205, 63
          %s207 = scalar_select %p206, %s205, 63
          %s208 = scalar_lea.hbm %s1, %s207
          %s209 = scalar_lea.vmem [#allocation2], 4
          // Predicated region
          $region49: #{tpu_custom_call.1} parent=31 // pred_check
            _
          $region50: #{tpu_custom_call.1} parent=31 // pred_check_branch
            %211 = sbr.rel target = $region52
          $region51: #{tpu_custom_call.1} parent=31 // pred_region
            %212 = sst [smem:[#allocation12]] [#allocation21]
            %213 = sst [smem:[#allocation13]] [#allocation20]
          $region52: #{tpu_custom_call.1} parent=31 // pred_fallthru
            _
          %215 = shalt.err (0)
          %s217 = sshll.u32 %s208, 4
          %s218 = int_to_ptr.hbm [resolvable:$true] %s217
          %s219 = sshll.u32 %s209, 4
          %s220 = int_to_ptr.vmem [resolvable:$true] %s219
          %222 = dma.hbm_to_vmem [thread:$0]  %s218, 16, %s220, [#allocation3]
          %s223 = sld [smem:[#allocation5 + $0x5]]
          %p224 = scmp.gt.s32.totalorder %s223, 0
          %s225 = scalar_select %p224, %s223, 0
          %p226 = scmp.lt.s32.totalorder %s225, 63
          %s227 = scalar_select %p226, %s225, 63
          %s228 = scalar_lea.hbm %s1, %s227
          %s229 = scalar_lea.vmem [#allocation2], 5
          // Predicated region
          $region53: #{tpu_custom_call.1} parent=31 // pred_check
            _
          $region54: #{tpu_custom_call.1} parent=31 // pred_check_branch
            %231 = sbr.rel target = $region56
          $region55: #{tpu_custom_call.1} parent=31 // pred_region
            %232 = sst [smem:[#allocation12]] [#allocation23]
            %233 = sst [smem:[#allocation13]] [#allocation22]
          $region56: #{tpu_custom_call.1} parent=31 // pred_fallthru
            _
          %235 = shalt.err (0)
          %s237 = sshll.u32 %s228, 4
          %s238 = int_to_ptr.hbm [resolvable:$true] %s237
          %s239 = sshll.u32 %s229, 4
          %s240 = int_to_ptr.vmem [resolvable:$true] %s239
          %242 = dma.hbm_to_vmem [thread:$0]  %s238, 16, %s240, [#allocation3]
          %s243 = sld [smem:[#allocation5 + $0x6]]
          %p244 = scmp.gt.s32.totalorder %s243, 0
          %s245 = scalar_select %p244, %s243, 0
          %p246 = scmp.lt.s32.totalorder %s245, 63
          %s247 = scalar_select %p246, %s245, 63
          %s248 = scalar_lea.hbm %s1, %s247
          %s249 = scalar_lea.vmem [#allocation2], 6
          // Predicated region
          $region57: #{tpu_custom_call.1} parent=31 // pred_check
            _
          $region58: #{tpu_custom_call.1} parent=31 // pred_check_branch
            %251 = sbr.rel target = $region60
          $region59: #{tpu_custom_call.1} parent=31 // pred_region
            %252 = sst [smem:[#allocation12]] [#allocation25]
            %253 = sst [smem:[#allocation13]] [#allocation24]
          $region60: #{tpu_custom_call.1} parent=31 // pred_fallthru
            _
          %255 = shalt.err (0)
          %s257 = sshll.u32 %s248, 4
          %s258 = int_to_ptr.hbm [resolvable:$true] %s257
          %s259 = sshll.u32 %s249, 4
          %s260 = int_to_ptr.vmem [resolvable:$true] %s259
          %262 = dma.hbm_to_vmem [thread:$0]  %s258, 16, %s260, [#allocation3]
          %s263 = sld [smem:[#allocation5 + $0x7]]
          %p264 = scmp.gt.s32.totalorder %s263, 0
          %s265 = scalar_select %p264, %s263, 0
          %p266 = scmp.lt.s32.totalorder %s265, 63
          %s267 = scalar_select %p266, %s265, 63
          %s268 = scalar_lea.hbm %s1, %s267
          %s269 = scalar_lea.vmem [#allocation2], 7
          // Predicated region
          $region61: #{tpu_custom_call.1} parent=31 // pred_check
            _
          $region62: #{tpu_custom_call.1} parent=31 // pred_check_branch
            %271 = sbr.rel target = $region64
          $region63: #{tpu_custom_call.1} parent=31 // pred_region
            %272 = sst [smem:[#allocation12]] [#allocation27]
            %273 = sst [smem:[#allocation13]] [#allocation26]
          $region64: #{tpu_custom_call.1} parent=31 // pred_fallthru
            _
          %275 = shalt.err (0)
          %s277 = sshll.u32 %s268, 4
          %s278 = int_to_ptr.hbm [resolvable:$true] %s277
          %s279 = sshll.u32 %s269, 4
          %s280 = int_to_ptr.vmem [resolvable:$true] %s279
          %282 = dma.hbm_to_vmem [thread:$0]  %s278, 16, %s280, [#allocation3]
        $region32: #{tpu_custom_call.1} parent=23 // pred_fallthru
          _
        %s283 = sadd.s32 %s26, 1
        %p284 = scmp.lt.s32.totalorder %s283, 2
        // Predicated region
        $region65: #{tpu_custom_call.1} parent=23 // pred_check
          %p285 = pneg %p284
        $region66: #{tpu_custom_call.1} parent=23 // pred_check_branch
          %287 = sbr.rel (%p285) target = $region68
        $region67: #{tpu_custom_call.1} parent=23 // pred_region
          %s288 = sand.u32 %s283, 1
          %s289 = smul.u32 %s283, 128
          %s290 = sld [smem:[#allocation5 + %s289]]
          %p291 = scmp.gt.s32.totalorder %s290, 0
          %s292 = scalar_select %p291, %s290, 0
          %p293 = scmp.lt.s32.totalorder %s292, 63
          %s294 = scalar_select %p293, %s292, 63
          %s295 = scalar_lea.hbm %s1, %s294
          %s296 = smul.u32 %s288, 8
          %s297 = scalar_lea.vmem [#allocation2], %s296
          %s298 = scalar_lea.sflag [#allocation3], %s288
          // Predicated region
          $region69: #{tpu_custom_call.1} parent=67 // pred_check
            _
          $region70: #{tpu_custom_call.1} parent=67 // pred_check_branch
            %300 = sbr.rel target = $region72
          $region71: #{tpu_custom_call.1} parent=67 // pred_region
            %301 = sst [smem:[#allocation12]] [#allocation29]
            %302 = sst [smem:[#allocation13]] [#allocation28]
          $region72: #{tpu_custom_call.1} parent=67 // pred_fallthru
            _
          %304 = shalt.err (0)
          %s306 = sshll.u32 %s295, 4
          %s307 = int_to_ptr.hbm [resolvable:$true] %s306
          %s308 = sshll.u32 %s297, 4
          %s309 = int_to_ptr.vmem [resolvable:$true] %s308
          %311 = dma.hbm_to_vmem [thread:$0]  %s307, 16, %s309, %s298
          %s312 = sadd.s32 %s289, 1
          %s313 = sld [smem:[#allocation5 + %s312]]
          %p314 = scmp.gt.s32.totalorder %s313, 0
          %s315 = scalar_select %p314, %s313, 0
          %p316 = scmp.lt.s32.totalorder %s315, 63
          %s317 = scalar_select %p316, %s315, 63
          %s318 = scalar_lea.hbm %s1, %s317
          %s319 = sadd.s32 1, %s296
          %s320 = scalar_lea.vmem [#allocation2], %s319
          // Predicated region
          $region73: #{tpu_custom_call.1} parent=67 // pred_check
            _
          $region74: #{tpu_custom_call.1} parent=67 // pred_check_branch
            %322 = sbr.rel target = $region76
          $region75: #{tpu_custom_call.1} parent=67 // pred_region
            %323 = sst [smem:[#allocation12]] [#allocation31]
            %324 = sst [smem:[#allocation13]] [#allocation30]
          $region76: #{tpu_custom_call.1} parent=67 // pred_fallthru
            _
          %326 = shalt.err (0)
          %s328 = sshll.u32 %s318, 4
          %s329 = int_to_ptr.hbm [resolvable:$true] %s328
          %s330 = sshll.u32 %s320, 4
          %s331 = int_to_ptr.vmem [resolvable:$true] %s330
          %333 = dma.hbm_to_vmem [thread:$0]  %s329, 16, %s331, %s298
          %s334 = sadd.s32 %s289, 2
          %s335 = sld [smem:[#allocation5 + %s334]]
          %p336 = scmp.gt.s32.totalorder %s335, 0
          %s337 = scalar_select %p336, %s335, 0
          %p338 = scmp.lt.s32.totalorder %s337, 63
          %s339 = scalar_select %p338, %s337, 63
          %s340 = scalar_lea.hbm %s1, %s339
          %s341 = sadd.s32 2, %s296
          %s342 = scalar_lea.vmem [#allocation2], %s341
          // Predicated region
          $region77: #{tpu_custom_call.1} parent=67 // pred_check
            _
          $region78: #{tpu_custom_call.1} parent=67 // pred_check_branch
            %344 = sbr.rel target = $region80
          $region79: #{tpu_custom_call.1} parent=67 // pred_region
            %345 = sst [smem:[#allocation12]] [#allocation33]
            %346 = sst [smem:[#allocation13]] [#allocation32]
          $region80: #{tpu_custom_call.1} parent=67 // pred_fallthru
            _
          %348 = shalt.err (0)
          %s350 = sshll.u32 %s340, 4
          %s351 = int_to_ptr.hbm [resolvable:$true] %s350
          %s352 = sshll.u32 %s342, 4
          %s353 = int_to_ptr.vmem [resolvable:$true] %s352
          %355 = dma.hbm_to_vmem [thread:$0]  %s351, 16, %s353, %s298
          %s356 = sadd.s32 %s289, 3
          %s357 = sld [smem:[#allocation5 + %s356]]
          %p358 = scmp.gt.s32.totalorder %s357, 0
          %s359 = scalar_select %p358, %s357, 0
          %p360 = scmp.lt.s32.totalorder %s359, 63
          %s361 = scalar_select %p360, %s359, 63
          %s362 = scalar_lea.hbm %s1, %s361
          %s363 = sadd.s32 3, %s296
          %s364 = scalar_lea.vmem [#allocation2], %s363
          // Predicated region
          $region81: #{tpu_custom_call.1} parent=67 // pred_check
            _
          $region82: #{tpu_custom_call.1} parent=67 // pred_check_branch
            %366 = sbr.rel target = $region84
          $region83: #{tpu_custom_call.1} parent=67 // pred_region
            %367 = sst [smem:[#allocation12]] [#allocation35]
            %368 = sst [smem:[#allocation13]] [#allocation34]
          $region84: #{tpu_custom_call.1} parent=67 // pred_fallthru
            _
          %370 = shalt.err (0)
          %s372 = sshll.u32 %s362, 4
          %s373 = int_to_ptr.hbm [resolvable:$true] %s372
          %s374 = sshll.u32 %s364, 4
          %s375 = int_to_ptr.vmem [resolvable:$true] %s374
          %377 = dma.hbm_to_vmem [thread:$0]  %s373, 16, %s375, %s298
          %s378 = sadd.s32 %s289, 4
          %s379 = sld [smem:[#allocation5 + %s378]]
          %p380 = scmp.gt.s32.totalorder %s379, 0
          %s381 = scalar_select %p380, %s379, 0
          %p382 = scmp.lt.s32.totalorder %s381, 63
          %s383 = scalar_select %p382, %s381, 63
          %s384 = scalar_lea.hbm %s1, %s383
          %s385 = sadd.s32 4, %s296
          %s386 = scalar_lea.vmem [#allocation2], %s385
          // Predicated region
          $region85: #{tpu_custom_call.1} parent=67 // pred_check
            _
          $region86: #{tpu_custom_call.1} parent=67 // pred_check_branch
            %388 = sbr.rel target = $region88
          $region87: #{tpu_custom_call.1} parent=67 // pred_region
            %389 = sst [smem:[#allocation12]] [#allocation37]
            %390 = sst [smem:[#allocation13]] [#allocation36]
          $region88: #{tpu_custom_call.1} parent=67 // pred_fallthru
            _
          %392 = shalt.err (0)
          %s394 = sshll.u32 %s384, 4
          %s395 = int_to_ptr.hbm [resolvable:$true] %s394
          %s396 = sshll.u32 %s386, 4
          %s397 = int_to_ptr.vmem [resolvable:$true] %s396
          %399 = dma.hbm_to_vmem [thread:$0]  %s395, 16, %s397, %s298
          %s400 = sadd.s32 %s289, 5
          %s401 = sld [smem:[#allocation5 + %s400]]
          %p402 = scmp.gt.s32.totalorder %s401, 0
          %s403 = scalar_select %p402, %s401, 0
          %p404 = scmp.lt.s32.totalorder %s403, 63
          %s405 = scalar_select %p404, %s403, 63
          %s406 = scalar_lea.hbm %s1, %s405
          %s407 = sadd.s32 5, %s296
          %s408 = scalar_lea.vmem [#allocation2], %s407
          // Predicated region
          $region89: #{tpu_custom_call.1} parent=67 // pred_check
            _
          $region90: #{tpu_custom_call.1} parent=67 // pred_check_branch
            %410 = sbr.rel target = $region92
          $region91: #{tpu_custom_call.1} parent=67 // pred_region
            %411 = sst [smem:[#allocation12]] [#allocation39]
            %412 = sst [smem:[#allocation13]] [#allocation38]
          $region92: #{tpu_custom_call.1} parent=67 // pred_fallthru
            _
          %414 = shalt.err (0)
          %s416 = sshll.u32 %s406, 4
          %s417 = int_to_ptr.hbm [resolvable:$true] %s416
          %s418 = sshll.u32 %s408, 4
          %s419 = int_to_ptr.vmem [resolvable:$true] %s418
          %421 = dma.hbm_to_vmem [thread:$0]  %s417, 16, %s419, %s298
          %s422 = sadd.s32 %s289, 6
          %s423 = sld [smem:[#allocation5 + %s422]]
          %p424 = scmp.gt.s32.totalorder %s423, 0
          %s425 = scalar_select %p424, %s423, 0
          %p426 = scmp.lt.s32.totalorder %s425, 63
          %s427 = scalar_select %p426, %s425, 63
          %s428 = scalar_lea.hbm %s1, %s427
          %s429 = sadd.s32 6, %s296
          %s430 = scalar_lea.vmem [#allocation2], %s429
          // Predicated region
          $region93: #{tpu_custom_call.1} parent=67 // pred_check
            _
          $region94: #{tpu_custom_call.1} parent=67 // pred_check_branch
            %432 = sbr.rel target = $region96
          $region95: #{tpu_custom_call.1} parent=67 // pred_region
            %433 = sst [smem:[#allocation12]] [#allocation41]
            %434 = sst [smem:[#allocation13]] [#allocation40]
          $region96: #{tpu_custom_call.1} parent=67 // pred_fallthru
            _
          %436 = shalt.err (0)
          %s438 = sshll.u32 %s428, 4
          %s439 = int_to_ptr.hbm [resolvable:$true] %s438
          %s440 = sshll.u32 %s430, 4
          %s441 = int_to_ptr.vmem [resolvable:$true] %s440
          %443 = dma.hbm_to_vmem [thread:$0]  %s439, 16, %s441, %s298
          %s444 = sadd.s32 %s289, 7
          %s445 = sld [smem:[#allocation5 + %s444]]
          %p446 = scmp.gt.s32.totalorder %s445, 0
          %s447 = scalar_select %p446, %s445, 0
          %p448 = scmp.lt.s32.totalorder %s447, 63
          %s449 = scalar_select %p448, %s447, 63
          %s450 = scalar_lea.hbm %s1, %s449
          %s451 = sadd.s32 7, %s296
          %s452 = scalar_lea.vmem [#allocation2], %s451
          // Predicated region
          $region97: #{tpu_custom_call.1} parent=67 // pred_check
            _
          $region98: #{tpu_custom_call.1} parent=67 // pred_check_branch
            %454 = sbr.rel target = $region100
          $region99: #{tpu_custom_call.1} parent=67 // pred_region
            %455 = sst [smem:[#allocation12]] [#allocation43]
            %456 = sst [smem:[#allocation13]] [#allocation42]
          $region100: #{tpu_custom_call.1} parent=67 // pred_fallthru
            _
          %458 = shalt.err (0)
          %s460 = sshll.u32 %s450, 4
          %s461 = int_to_ptr.hbm [resolvable:$true] %s460
          %s462 = sshll.u32 %s452, 4
          %s463 = int_to_ptr.vmem [resolvable:$true] %s462
          %465 = dma.hbm_to_vmem [thread:$0]  %s461, 16, %s463, %s298
        $region68: #{tpu_custom_call.1} parent=23 // pred_fallthru
          _
        %s466 = sand.u32 %s26, 1
        %s467 = smul.u32 %s466, 8
        %s468 = scalar_lea.vmem [#allocation2], %s467
        %s469 = scalar_lea.sflag [#allocation3], %s466
        %s470 = smul.u32 8, 1
        %s471 = sshll.u32 %s470, 4
        %472 = dma.done %s469, %s471
        %v473 = vld [vmem:[%s468] sm:$0xff]
        %v474 = vld [vmem:[#allocation6] sm:$0xff]
        %v475 = vadd.f32 %v473, %v474
        %476 = vst [vmem:[%s119] sm:$0xff] %v475
        %s477 = sand.u32 %s55, 1
        %s478 = scalar_lea.sflag [#allocation8], %s477
        %s479 = sand.u32 %s55, 1
        %s480 = smul.addr %s479, 8
        %s481 = scalar_lea.vmem [#allocation9], %s480
        // Predicated region
        $region101: #{tpu_custom_call.1} parent=23 // pred_check
          %p482 = pneg %p65
        $region102: #{tpu_custom_call.1} parent=23 // pred_check_branch
          %484 = sbr.rel (%p482) target = $region104
        $region103: #{tpu_custom_call.1} parent=23 // pred_region
          %486 = vsyncadd %s478, 0
          %s487 = smul.addr %s26, 8
          %s488 = scalar_lea.hbm %s3, %s487
          %s490 = sshll.u32 %s481, 4
          %s491 = int_to_ptr.vmem [resolvable:$true] %s490
          %s492 = sshll.u32 %s488, 4
          %s493 = int_to_ptr.hbm [resolvable:$true] %s492
          %495 = dma.vmem_to_hbm [thread:$0]  %s491, 128, %s493, %s478
        $region104: #{tpu_custom_call.1} parent=23 // pred_fallthru
          _
      $region24: #{tpu_custom_call.1} parent=5 // pred_fallthru
        _
      %p496 = scmp.le.s32.totalorder 2, %s21
      // Predicated region
      $region105: #{tpu_custom_call.1} parent=5 // pred_check
        %p497 = pneg %p496
      $region106: #{tpu_custom_call.1} parent=5 // pred_check_branch
        %499 = sbr.rel (%p497) target = $region108
      $region107: #{tpu_custom_call.1} parent=5 // pred_region
        %s500 = ssub.s32 %s21, 2
        // Predicated region
        $region109: #{tpu_custom_call.1} parent=107 // pred_check
          %p501 = pneg %p71
        $region110: #{tpu_custom_call.1} parent=107 // pred_check_branch
          %503 = sbr.rel (%p501) target = $region112
        $region111: #{tpu_custom_call.1} parent=107 // pred_region
          %s504 = sand.u32 %s56, 1
          %s505 = scalar_lea.sflag [#allocation8], %s504
          %s506 = sand.u32 %s56, 1
          %s507 = smul.addr %s506, 8
          %s508 = scalar_lea.vmem [#allocation9], %s507
          %510 = dma.done %s505, 128
        $region112: #{tpu_custom_call.1} parent=107 // pred_fallthru
          _
      $region108: #{tpu_custom_call.1} parent=5 // pred_fallthru
        _
    $region6: #{tpu_custom_call.1} parent=1 // loop_footer
      %s25 = sadd.s32 1, %s21
    $region7: #{tpu_custom_call.1} parent=1 // loop_footer_branch
      %20 = sbr.rel target = $region3
    $region8: #{tpu_custom_call.1} parent=1 // loop_exit
      _
    %511 = vsyncpa [#allocation7], 1
    %s512 = scalar_lea.sflag [#allocation7], 1
    %513 = vsyncpa %s512, 1
    %514 = vsyncpa [#allocation8], 1
    %s515 = scalar_lea.sflag [#allocation8], 1
    %516 = vsyncpa %s515, 1
  %517 = vsyncmov [#allocation3]
  %s518 = vpop.sfrf %517
  %p519 = scmp.eq.s32.totalorder %s518, 0
  %p520 = pneg %p519
  %522 = shalt.err (%p520)
  %s523 = scalar_lea.sflag [#allocation3], 1
  %524 = vsyncmov %s523
  %s525 = vpop.sfrf %524
  %p526 = scmp.eq.s32.totalorder %s525, 0
  %p527 = pneg %p526
  %529 = shalt.err (%p527)

</llo_original>
